<compile_context>
chip_gen: v6e
topology: v6e:2x2x1
jax: 0.10.0
libtpu: 0.0.40
codegen_flags: <defaults>
</compile_context>

<pallas_src>
import math

import jax
import jax.numpy as jnp
from jax import lax
from jax.experimental import pallas as pl
from jax.experimental.pallas import tpu as pltpu

BN_EPS = 1e-5     # params.BATCHNORM_EPSILON
LANE = 128        # TPU lane width


def _round_up(x, m):
    return (x + m - 1) // m * m


def _vmem_budget_bytes():
    """Generation-aware VMEM budget: ~3/4 of physical VMEM (v5e/v6e: 128 MiB,
    v7x: 64 MiB per TC).  Conservative 48 MiB fallback if the query fails."""
    cap = None
    try:
        info = pltpu.get_tpu_info()
        for name in ("vmem_capacity_bytes", "vmem_size_bytes", "vmem_bytes"):
            cap = getattr(info, name, None)
            if cap:
                break
    except Exception:
        cap = None
    if not cap:
        cap = 64 * 1024 * 1024
    return min(int(cap) * 3 // 4, 100 * 1024 * 1024)


# ----------------------------- Pallas kernel --------------------------------

def _make_fused_kernel(inv_m, out_channels):
    """Two-phase fused conv-matmul + BN(batch stats) + ReLU kernel.

    inv_m: 1 / (true number of output rows) for the batch statistics.
    Padded zero rows contribute 0 to both the sum and the raw sum-of-squares,
    so the single-pass statistics are exact with no correction term.
    """

    def kernel(p_ref, w_ref, g_ref, b_ref, o_ref,
               y_slab, sum_ref, sq_ref, scale_ref, shift_ref):
        phase = pl.program_id(0)
        i = pl.program_id(1)

        # phase 0: conv as matmul (bf16 operands, f32 acc); accumulate per-
        # channel sum and raw sum-of-squares from the f32 result, then park the
        # tile in the bf16 VMEM slab (stats never see the downcast).
        @pl.when(phase == 0)
        def _():
            @pl.when(i == 0)
            def _():
                sum_ref[...] = jnp.zeros_like(sum_ref)
                sq_ref[...] = jnp.zeros_like(sq_ref)

            y = jnp.dot(p_ref[...], w_ref[...],
                        preferred_element_type=jnp.float32)
            sum_ref[...] += jnp.sum(y, axis=0, keepdims=True)
            sq_ref[...] += jnp.sum(y * y, axis=0, keepdims=True)
            y_slab[i] = y.astype(y_slab.dtype)

        # phase 1: finalize batch stats once, fused affine + ReLU, narrow
        # (tm, Cout) store (no lane-padded writeback).
        @pl.when(phase == 1)
        def _():
            @pl.when(i == 0)
            def _():
                mean = sum_ref[...] * inv_m
                var = jnp.maximum(sq_ref[...] * inv_m - mean * mean, 0.0)
                inv_std = lax.rsqrt(var + BN_EPS)
                sc = g_ref[...] * inv_std
                scale_ref[...] = sc
                shift_ref[...] = b_ref[...] - mean * sc

            y = y_slab[i].astype(jnp.float32)
            z = jnp.maximum(y * scale_ref[...] + shift_ref[...], 0.0)
            o_ref[...] = z[:, :out_channels]

    return kernel


# ------------------------------- wrapper -------------------------------------

def _same_pad_amounts(in_size, k, stride, dilation=1):
    """Conv2dSame / TF-SAME padding: odd leftover goes on the bottom/right."""
    eff_k = (k - 1) * dilation + 1
    out_size = (in_size + stride - 1) // stride
    pad = max(0, (out_size - 1) * stride + eff_k - in_size)
    return pad // 2, pad - pad // 2, out_size


def conv_bn_relu(x_nchw, weight, gamma, beta, stride):
    N, C, H, W = x_nchw.shape
    O, _, KH, KW = weight.shape
    sh = sw = stride

    pt, pb, OH = _same_pad_amounts(H, KH, sh)
    pleft, pright, OW = _same_pad_amounts(W, KW, sw)

    # NCHW -> NHWC, TF-SAME padding (odd amount goes bottom/right).
    x = jnp.transpose(x_nchw, (0, 2, 3, 1))
    x = jnp.pad(x, ((0, 0), (pt, pb), (pleft, pright), (0, 0)))

    # im2col: rows ordered (n, oh, ow), cols ordered (kh, kw, c).
    # TODO(synk): for large H/W or stride-1 shapes, build patches in-kernel
    # from an NHWC block (or use allow_input_fusion) to avoid this extra HBM
    # round-trip; fine at C=4, 16x16.
    cols = []
    for kh in range(KH):
        for kw in range(KW):
            cols.append(x[:, kh:kh + (OH - 1) * sh + 1:sh,
                           kw:kw + (OW - 1) * sw + 1:sw, :])
    patches = jnp.stack(cols, axis=3).reshape(N * OH * OW, KH * KW * C)

    M, K = patches.shape
    # Row tiling: multiple of 8 sublanes, up to 1024 rows per tile (large tiles
    # amortize the ~0.35 us/step pipeline overhead); M padded up to the tile.
    tm = min(1024, _round_up(M, 8))
    M_pad = _round_up(M, tm)
    grid_m = M_pad // tm
    n_pad_rows = M_pad - M  # zero rows: contribute 0 to sum and sumsq (exact)
    del n_pad_rows
    # Only the matmul output lane dim is padded (full MXU columns / lane-dense
    # slab); the K=KH*KW*C patch stream stays unpadded in HBM.
    O_pad = _round_up(O, LANE)

    patches = jnp.pad(patches, ((0, M_pad - M), (0, 0))).astype(jnp.bfloat16)
    w_mat = jnp.transpose(weight, (2, 3, 1, 0)).reshape(K, O)
    w_mat = jnp.pad(w_mat, ((0, 0), (0, O_pad - O))).astype(jnp.bfloat16)
    gamma_p = jnp.pad(gamma.astype(jnp.float32), (0, O_pad - O)).reshape(1, O_pad)
    beta_p = jnp.pad(beta.astype(jnp.float32), (0, O_pad - O)).reshape(1, O_pad)

    # VMEM working set (physical lane padding to 128 included).  The bf16 y
    # slab dominates; budget is generation-aware.
    budget = _vmem_budget_bytes()
    vmem_est = (2 * tm * _round_up(K, LANE) * 2      # patch tile double-buffer (bf16)
                + _round_up(K, 16) * O_pad * 2       # weight matrix (bf16)
                + 2 * tm * _round_up(O, LANE) * 4    # output tile double-buffer (f32)
                + M_pad * O_pad * 2                  # bf16 y slab
                + 16 * O_pad * 4)                    # stats scratch + gamma/beta
    # TODO(synk): fall back to a two-pass (HBM-resident y) variant when the
    # conv output no longer fits the per-generation VMEM budget.
    assert vmem_est < budget, (
        f"fused single-pass kernel needs ~{vmem_est} B VMEM, budget {budget} B")

    kernel = _make_fused_kernel(1.0 / M, O)

    # Phase-dependent index maps.  Patches stream only during phase 0 and stay
    # pinned on the last-fetched block afterwards (no redundant DMA at the
    # phase transition); output blocks only advance (write back) in phase 1.
    def patches_map(p, i):
        return (i * (1 - p) + (grid_m - 1) * p, 0)

    def out_map(p, i):
        return (i * p, 0)

    out_padded = pl.pallas_call(
        kernel,
        out_shape=jax.ShapeDtypeStruct((M_pad, O), jnp.float32),
        grid_spec=pltpu.PrefetchScalarGridSpec(
            num_scalar_prefetch=0,
            grid=(2, grid_m),                      # (phase, row tile)
            in_specs=[
                pl.BlockSpec((tm, K), patches_map),
                pl.BlockSpec((K, O_pad), lambda p, i: (0, 0)),
                pl.BlockSpec((1, O_pad), lambda p, i: (0, 0)),
                pl.BlockSpec((1, O_pad), lambda p, i: (0, 0)),
            ],
            out_specs=pl.BlockSpec((tm, O), out_map),
            scratch_shapes=[
                pltpu.VMEM((grid_m, tm, O_pad), jnp.bfloat16),  # y slab
                pltpu.VMEM((1, O_pad), jnp.float32),            # channel sum
                pltpu.VMEM((1, O_pad), jnp.float32),            # channel sum sq
                pltpu.VMEM((1, O_pad), jnp.float32),            # scale
                pltpu.VMEM((1, O_pad), jnp.float32),            # shift
            ]),
        compiler_params=pltpu.CompilerParams(
            # Slab / stats accumulation requires sequential grid axes.
            # TODO(synk): on v7x, split the row-tile axis across the 2 TCs with
            # per-core partial sums + cross-core combine for large M.
            dimension_semantics=("arbitrary", "arbitrary"),
            vmem_limit_bytes=budget),
    )(patches, w_mat, gamma_p, beta_p)

    # Strip row padding; back to NCHW (the module's output contract).
    out = out_padded[:M].reshape(N, OH, OW, O)
    return jnp.transpose(out, (0, 3, 1, 2))


# ------------------------------ reference -----------------------------------

def reference(x_nchw, weight, gamma, beta, stride, mimic_kernel=False):
    """f32 reference.  mimic_kernel=True reproduces the kernel's numerics:
    bf16 MXU operands (f32 accumulate) and bf16 rounding of the VMEM-resident
    y that feeds the affine (stats taken from the f32 y, as in the kernel)."""
    N, C, H, W = x_nchw.shape
    O, _, KH, KW = weight.shape
    pt, pb, _ = _same_pad_amounts(H, KH, stride)
    pleft, pright, _ = _same_pad_amounts(W, KW, stride)
    xw, ww = x_nchw, weight
    if mimic_kernel:
        xw = xw.astype(jnp.bfloat16).astype(jnp.float32)
        ww = ww.astype(jnp.bfloat16).astype(jnp.float32)
    y = lax.conv_general_dilated(
        xw, ww, window_strides=(stride, stride),
        padding=((pt, pb), (pleft, pright)),
        dimension_numbers=("NCHW", "OIHW", "NCHW"))
    mean = jnp.mean(y, axis=(0, 2, 3), keepdims=True)
    var = jnp.mean((y - mean) ** 2, axis=(0, 2, 3), keepdims=True)
    y_aff = y.astype(jnp.bfloat16).astype(jnp.float32) if mimic_kernel else y
    yhat = (y_aff - mean) / jnp.sqrt(var + BN_EPS)
    yhat = yhat * gamma.reshape(1, O, 1, 1) + beta.reshape(1, O, 1, 1)
    return jnp.maximum(yhat, 0.0)


# --------------------------------- main --------------------------------------

if __name__ == "__main__":
    key = jax.random.PRNGKey(0)
    k1, k2, k3, k4 = jax.random.split(key, 4)

    # Conv(kernel=3, stride=2, input_dim=4, output_dim=8)
    N, Cin, H, W = 2, 4, 16, 16
    Cout, ksize, stride = 8, 3, 2

    x = jax.random.normal(k1, (N, Cin, H, W), dtype=jnp.float32)
    fan_in = Cin * ksize * ksize
    weight = (jax.random.normal(k2, (Cout, Cin, ksize, ksize), jnp.float32)
              * math.sqrt(2.0 / fan_in))
    gamma = 1.0 + 0.1 * jax.random.normal(k3, (Cout,), jnp.float32)
    beta = 0.1 * jax.random.normal(k4, (Cout,), jnp.float32)

    out = conv_bn_relu(x, weight, gamma, beta, stride)
    out = jax.block_until_ready(out)

    ref_f32 = reference(x, weight, gamma, beta, stride)
    assert out.shape == ref_f32.shape == (N, Cout, 8, 8), (out.shape, ref_f32.shape)

    # Tight check vs a reference that mimics the kernel's low-precision paths
    # (isolates structural errors from expected bf16 rounding).
    ref_mimic = reference(x, weight, gamma, beta, stride, mimic_kernel=True)
    err_m = float(jnp.max(jnp.abs(out - ref_mimic)))
    if not jnp.allclose(out, ref_mimic, atol=5e-3, rtol=5e-3):
        raise AssertionError(
            f"mismatch vs kernel-mimicking reference, max abs err = {err_m}")

    # Looser check vs full-f32 module semantics (tolerance sized for the bf16
    # MXU operand rounding + bf16 slab rounding of the affine input; all
    # accumulation stays f32).
    err_f = float(jnp.max(jnp.abs(out - ref_f32)))
    if not jnp.allclose(out, ref_f32, atol=3e-2, rtol=3e-2):
        raise AssertionError(
            f"mismatch vs f32 reference, max abs err = {err_f}")

    print("KERNEL_OK")
</pallas_src>

<mosaic_0001>
module attributes {stable_mosaic.version = 11 : i64} {
  func.func @kernel(%arg0: i32, %arg1: i32, %arg2: memref<128x36xbf16, #tpu.memory_space<vmem>>, %arg3: memref<36x128xbf16, #tpu.memory_space<vmem>>, %arg4: memref<1x128xf32, #tpu.memory_space<vmem>>, %arg5: memref<1x128xf32, #tpu.memory_space<vmem>>, %arg6: memref<128x8xf32, #tpu.memory_space<vmem>>, %arg7: memref<1x128x128xbf16, #tpu.memory_space<vmem>>, %arg8: memref<1x128xf32, #tpu.memory_space<vmem>>, %arg9: memref<1x128xf32, #tpu.memory_space<vmem>>, %arg10: memref<1x128xf32, #tpu.memory_space<vmem>>, %arg11: memref<1x128xf32, #tpu.memory_space<vmem>>) attributes {dimension_semantics = [#tpu.dimension_semantics<arbitrary>, #tpu.dimension_semantics<arbitrary>], iteration_bounds = array<i64: 2, 1>, scalar_prefetch = 0 : i64, scratch_operands = 5 : i64, tpu.core_type = #tpu.core_type<tc>, window_params = [{transform_indices = @transform_0, window_bounds = array<i64: 128, 36>}, {pipeline_mode = #tpu.pipeline_mode<synchronous>, transform_indices = @transform_1, window_bounds = array<i64: 36, 128>}, {pipeline_mode = #tpu.pipeline_mode<synchronous>, transform_indices = @transform_2, window_bounds = array<i64: 1, 128>}, {pipeline_mode = #tpu.pipeline_mode<synchronous>, transform_indices = @transform_3, window_bounds = array<i64: 1, 128>}, {transform_indices = @transform_4, window_bounds = array<i64: 128, 8>}]} {
    %c0_i32 = arith.constant 0 : i32
    %0 = arith.cmpi eq, %arg0, %c0_i32 : i32
    %1 = arith.extui %0 : i1 to i32
    %c0_i32_0 = arith.constant 0 : i32
    %2 = arith.cmpi ne, %1, %c0_i32_0 : i32
    scf.if %2 {
      %c0_i32_2 = arith.constant 0 : i32
      %6 = arith.cmpi eq, %arg1, %c0_i32_2 : i32
      %7 = arith.extui %6 : i1 to i32
      %c0_i32_3 = arith.constant 0 : i32
      %8 = arith.cmpi ne, %7, %c0_i32_3 : i32
      scf.if %8 {
        %cst_19 = arith.constant 0.000000e+00 : f32
        %28 = vector.broadcast %cst_19 : f32 to vector<1x128xf32>
        %c0_20 = arith.constant 0 : index
        %c0_21 = arith.constant 0 : index
        %29 = vector.load %arg8[%c0_20, %c0_21] : memref<1x128xf32, #tpu.memory_space<vmem>>, vector<1x128xf32>
        tpu.vector_store %arg8[%c0_20, %c0_21], %28 {strides = array<i32>} : memref<1x128xf32, #tpu.memory_space<vmem>>, vector<1x128xf32>,
        %cst_22 = arith.constant 0.000000e+00 : f32
        %30 = vector.broadcast %cst_22 : f32 to vector<1x128xf32>
        %c0_23 = arith.constant 0 : index
        %c0_24 = arith.constant 0 : index
        %31 = vector.load %arg9[%c0_23, %c0_24] : memref<1x128xf32, #tpu.memory_space<vmem>>, vector<1x128xf32>
        tpu.vector_store %arg9[%c0_23, %c0_24], %30 {strides = array<i32>} : memref<1x128xf32, #tpu.memory_space<vmem>>, vector<1x128xf32>,
      } else {
      }
      %c0 = arith.constant 0 : index
      %c0_4 = arith.constant 0 : index
      %9 = vector.load %arg2[%c0, %c0_4] : memref<128x36xbf16, #tpu.memory_space<vmem>>, vector<128x36xbf16>
      %c0_5 = arith.constant 0 : index
      %c0_6 = arith.constant 0 : index
      %10 = vector.load %arg3[%c0_5, %c0_6] : memref<36x128xbf16, #tpu.memory_space<vmem>>, vector<36x128xbf16>
      %cst = arith.constant dense<0.000000e+00> : vector<128x128xf32>
      %11 = tpu.matmul %9, %10, %cst {dimension_numbers = #tpu.dot_dimension_numbers<[1], [0], [0], [1], [0, 0, 1, 1], [], []>} : vector<128x36xbf16>, vector<36x128xbf16>, vector<128x128xf32> -> vector<128x128xf32>
      %c0_7 = arith.constant 0 : index
      %c0_8 = arith.constant 0 : index
      %12 = vector.load %arg8[%c0_7, %c0_8] : memref<1x128xf32, #tpu.memory_space<vmem>>, vector<1x128xf32>
      %cst_9 = arith.constant dense<0.000000e+00> : vector<128xf32>
      %13 = vector.multi_reduction <add>, %11, %cst_9 [0] : vector<128x128xf32> to vector<128xf32>
      %14 = vector.shape_cast %13 : vector<128xf32> to vector<1x128xf32>
      %15 = arith.addf %12, %14 : vector<1x128xf32>
      %c0_10 = arith.constant 0 : index
      %c0_11 = arith.constant 0 : index
      %16 = vector.load %arg8[%c0_10, %c0_11] : memref<1x128xf32, #tpu.memory_space<vmem>>, vector<1x128xf32>
      tpu.vector_store %arg8[%c0_10, %c0_11], %15 {strides = array<i32>} : memref<1x128xf32, #tpu.memory_space<vmem>>, vector<1x128xf32>,
      %c0_12 = arith.constant 0 : index
      %c0_13 = arith.constant 0 : index
      %17 = vector.load %arg9[%c0_12, %c0_13] : memref<1x128xf32, #tpu.memory_space<vmem>>, vector<1x128xf32>
      %18 = arith.mulf %11, %11 : vector<128x128xf32>
      %cst_14 = arith.constant dense<0.000000e+00> : vector<128xf32>
      %19 = vector.multi_reduction <add>, %18, %cst_14 [0] : vector<128x128xf32> to vector<128xf32>
      %20 = vector.shape_cast %19 : vector<128xf32> to vector<1x128xf32>
      %21 = arith.addf %17, %20 : vector<1x128xf32>
      %c0_15 = arith.constant 0 : index
      %c0_16 = arith.constant 0 : index
      %22 = vector.load %arg9[%c0_15, %c0_16] : memref<1x128xf32, #tpu.memory_space<vmem>>, vector<1x128xf32>
      tpu.vector_store %arg9[%c0_15, %c0_16], %21 {strides = array<i32>} : memref<1x128xf32, #tpu.memory_space<vmem>>, vector<1x128xf32>,
      %23 = arith.truncf %11 : vector<128x128xf32> to vector<128x128xbf16>
      %24 = arith.index_cast %arg1 : i32 to index
      %c0_17 = arith.constant 0 : index
      %c0_18 = arith.constant 0 : index
      %25 = vector.load %arg7[%24, %c0_17, %c0_18] : memref<1x128x128xbf16, #tpu.memory_space<vmem>>, vector<1x128x128xbf16>
      %26 = vector.shape_cast %25 : vector<1x128x128xbf16> to vector<128x128xbf16>
      %27 = vector.shape_cast %23 : vector<128x128xbf16> to vector<1x128x128xbf16>
      tpu.vector_store %arg7[%24, %c0_17, %c0_18], %27 {strides = array<i32>} : memref<1x128x128xbf16, #tpu.memory_space<vmem>>, vector<1x128x128xbf16>,
    } else {
    }
    %c1_i32 = arith.constant 1 : i32
    %3 = arith.cmpi eq, %arg0, %c1_i32 : i32
    %4 = arith.extui %3 : i1 to i32
    %c0_i32_1 = arith.constant 0 : i32
    %5 = arith.cmpi ne, %4, %c0_i32_1 : i32
    scf.if %5 {
      %c0_i32_2 = arith.constant 0 : i32
      %6 = arith.cmpi eq, %arg1, %c0_i32_2 : i32
      %7 = arith.extui %6 : i1 to i32
      %c0_i32_3 = arith.constant 0 : i32
      %8 = arith.cmpi ne, %7, %c0_i32_3 : i32
      scf.if %8 {
        %c0_11 = arith.constant 0 : index
        %c0_12 = arith.constant 0 : index
        %23 = vector.load %arg8[%c0_11, %c0_12] : memref<1x128xf32, #tpu.memory_space<vmem>>, vector<1x128xf32>
        %cst_13 = arith.constant 7.812500e-03 : f32
        %24 = vector.broadcast %cst_13 : f32 to vector<1x128xf32>
        %25 = arith.mulf %23, %24 : vector<1x128xf32>
        %c0_14 = arith.constant 0 : index
        %c0_15 = arith.constant 0 : index
        %26 = vector.load %arg9[%c0_14, %c0_15] : memref<1x128xf32, #tpu.memory_space<vmem>>, vector<1x128xf32>
        %cst_16 = arith.constant 7.812500e-03 : f32
        %27 = vector.broadcast %cst_16 : f32 to vector<1x128xf32>
        %28 = arith.mulf %26, %27 : vector<1x128xf32>
        %29 = arith.mulf %25, %25 : vector<1x128xf32>
        %30 = arith.subf %28, %29 : vector<1x128xf32>
        %cst_17 = arith.constant 0.000000e+00 : f32
        %31 = vector.broadcast %cst_17 : f32 to vector<1x128xf32>
        %32 = arith.maximumf %30, %31 : vector<1x128xf32>
        %cst_18 = arith.constant 9.99999974E-6 : f32
        %33 = vector.broadcast %cst_18 : f32 to vector<1x128xf32>
        %34 = arith.addf %32, %33 : vector<1x128xf32>
        %35 = math.rsqrt %34 : vector<1x128xf32>
        %c0_19 = arith.constant 0 : index
        %c0_20 = arith.constant 0 : index
        %36 = vector.load %arg4[%c0_19, %c0_20] : memref<1x128xf32, #tpu.memory_space<vmem>>, vector<1x128xf32>
        %37 = arith.mulf %36, %35 : vector<1x128xf32>
        %c0_21 = arith.constant 0 : index
        %c0_22 = arith.constant 0 : index
        %38 = vector.load %arg10[%c0_21, %c0_22] : memref<1x128xf32, #tpu.memory_space<vmem>>, vector<1x128xf32>
        tpu.vector_store %arg10[%c0_21, %c0_22], %37 {strides = array<i32>} : memref<1x128xf32, #tpu.memory_space<vmem>>, vector<1x128xf32>,
        %c0_23 = arith.constant 0 : index
        %c0_24 = arith.constant 0 : index
        %39 = vector.load %arg5[%c0_23, %c0_24] : memref<1x128xf32, #tpu.memory_space<vmem>>, vector<1x128xf32>
        %40 = arith.mulf %25, %37 : vector<1x128xf32>
        %41 = arith.subf %39, %40 : vector<1x128xf32>
        %c0_25 = arith.constant 0 : index
        %c0_26 = arith.constant 0 : index
        %42 = vector.load %arg11[%c0_25, %c0_26] : memref<1x128xf32, #tpu.memory_space<vmem>>, vector<1x128xf32>
        tpu.vector_store %arg11[%c0_25, %c0_26], %41 {strides = array<i32>} : memref<1x128xf32, #tpu.memory_space<vmem>>, vector<1x128xf32>,
      } else {
      }
      %9 = arith.index_cast %arg1 : i32 to index
      %c0 = arith.constant 0 : index
      %c0_4 = arith.constant 0 : index
      %10 = vector.load %arg7[%9, %c0, %c0_4] : memref<1x128x128xbf16, #tpu.memory_space<vmem>>, vector<1x128x128xbf16>
      %11 = vector.shape_cast %10 : vector<1x128x128xbf16> to vector<128x128xbf16>
      %12 = arith.extf %11 : vector<128x128xbf16> to vector<128x128xf32>
      %c0_5 = arith.constant 0 : index
      %c0_6 = arith.constant 0 : index
      %13 = vector.load %arg10[%c0_5, %c0_6] : memref<1x128xf32, #tpu.memory_space<vmem>>, vector<1x128xf32>
      %14 = vector.broadcast %13 : vector<1x128xf32> to vector<128x128xf32>
      %15 = arith.mulf %12, %14 : vector<128x128xf32>
      %c0_7 = arith.constant 0 : index
      %c0_8 = arith.constant 0 : index
      %16 = vector.load %arg11[%c0_7, %c0_8] : memref<1x128xf32, #tpu.memory_space<vmem>>, vector<1x128xf32>
      %17 = vector.broadcast %16 : vector<1x128xf32> to vector<128x128xf32>
      %18 = arith.addf %15, %17 : vector<128x128xf32>
      %cst = arith.constant 0.000000e+00 : f32
      %19 = vector.broadcast %cst : f32 to vector<128x128xf32>
      %20 = arith.maximumf %18, %19 : vector<128x128xf32>
      %21 = vector.extract_strided_slice %20 {offsets = [0, 0], sizes = [128, 8], strides = [1, 1]} : vector<128x128xf32> to vector<128x8xf32>
      %c0_9 = arith.constant 0 : index
      %c0_10 = arith.constant 0 : index
      %22 = vector.load %arg6[%c0_9, %c0_10] : memref<128x8xf32, #tpu.memory_space<vmem>>, vector<128x8xf32>
      tpu.vector_store %arg6[%c0_9, %c0_10], %21 {strides = array<i32>} : memref<128x8xf32, #tpu.memory_space<vmem>>, vector<128x8xf32>,
    } else {
    }
    return
  }
  func.func @transform_0(%arg0: i32, %arg1: i32) -> (i32, i32) {
    %c1_i32 = arith.constant 1 : i32
    %0 = arith.subi %c1_i32, %arg0 : i32
    %1 = arith.muli %arg1, %0 : i32
    %c0_i32 = arith.constant 0 : i32
    %2 = arith.muli %c0_i32, %arg0 : i32
    %3 = arith.addi %1, %2 : i32
    %c0_i32_0 = arith.constant 0 : i32
    %c0_i32_1 = arith.constant 0 : i32
    return %3, %c0_i32_0 : i32, i32
  }
  func.func @transform_1(%arg0: i32, %arg1: i32) -> (i32, i32) {
    %c0_i32 = arith.constant 0 : i32
    %c0_i32_0 = arith.constant 0 : i32
    %c0_i32_1 = arith.constant 0 : i32
    return %c0_i32, %c0_i32_0 : i32, i32
  }
  func.func @transform_2(%arg0: i32, %arg1: i32) -> (i32, i32) {
    %c0_i32 = arith.constant 0 : i32
    %c0_i32_0 = arith.constant 0 : i32
    %c0_i32_1 = arith.constant 0 : i32
    return %c0_i32, %c0_i32_0 : i32, i32
  }
  func.func @transform_3(%arg0: i32, %arg1: i32) -> (i32, i32) {
    %c0_i32 = arith.constant 0 : i32
    %c0_i32_0 = arith.constant 0 : i32
    %c0_i32_1 = arith.constant 0 : i32
    return %c0_i32, %c0_i32_0 : i32, i32
  }
  func.func @transform_4(%arg0: i32, %arg1: i32) -> (i32, i32) {
    %0 = arith.muli %arg1, %arg0 : i32
    %c0_i32 = arith.constant 0 : i32
    %c0_i32_0 = arith.constant 0 : i32
    return %0, %c0_i32 : i32, i32
  }
}

</mosaic_0001>

<llo_original>
// kernel: tpu_custom_call.1
$region0: #{tpu_custom_call.1}
  #allocation0 [shape = 'u32[]', space=smem, size = 0x4, offset = 0x4, fixed_abs, tag = 'smem constant byte address 0x4 - core index']
  #allocation1 [shape = 'u32[144,128]{1,0:T(1,128)}', space=vmem, size = 0x12000, scoped, tag = 'internal scratch']
  #allocation2 [shape = 'bf16[1,128,128]{2,1,0:T(8,128)(2,1)}', space=vmem, size = 0x8000, scoped, tag = 'scratch operand']
  #allocation3 [shape = 'f32[1,128]{1,0:T(1,128)}', space=vmem, size = 0x200, scoped, tag = 'scratch operand']
  #allocation4 [shape = 'f32[1,128]{1,0:T(1,128)}', space=vmem, size = 0x200, scoped, tag = 'scratch operand']
  #allocation5 [shape = 'f32[1,128]{1,0:T(1,128)}', space=vmem, size = 0x200, scoped, tag = 'scratch operand']
  #allocation6 [shape = 'f32[1,128]{1,0:T(1,128)}', space=vmem, size = 0x200, scoped, tag = 'scratch operand']
  %s0 = inlined_call_operand.vmem [shape: bf16[128,36], index: 0, kind: input, shape index: {}]
  %s1 = inlined_call_operand.vmem [shape: bf16[36,128], index: 1, kind: input, shape index: {}]
  %s2 = inlined_call_operand.vmem [shape: f32[1,128], index: 2, kind: input, shape index: {}]
  %s3 = inlined_call_operand.vmem [shape: f32[1,128], index: 3, kind: input, shape index: {}]
  %s4 = inlined_call_operand.vmem [shape: f32[128,8], index: 4, kind: output, shape index: {}]
  %s5 = sld [smem:[#allocation0]]
  $region65: #{tpu_custom_call.1} parent=0
    _
  %s7 = ssub.s32 1, %s5
  %s8 = scalar_select 0, %s7, %s5
  loop: start=0, step=1, limit=4
  $region2: #{tpu_custom_call.1} parent=0 // loop_pre_header
    _
  $region3: #{tpu_custom_call.1} parent=0 // loop_header
    %s10 = sphi 0, %s14
    %p11 = scmp.ge.s32.totalorder %s10, 4
    %s17 = sphi 0, %s29
    %s18 = sphi 0, %s25
    %s19 = sphi 0, %s17
    %s20 = sphi 0, %s18
    %s21 = sphi 0, %s19
    %s22 = sphi 0, %s20
    %s36 = sphi 0, %s38
    %s39 = sphi 0, %s36
    %s40 = sphi 0, %s39
    %s56 = sphi 0, %s40
    %s60 = sphi 0, %s60
    %s62 = sphi 0, %s60
    %s63 = sphi 0, %s62
    %s77 = sphi 0, %s63
    %s81 = sphi 0, %s81
    %s83 = sphi 0, %s81
    %s84 = sphi 0, %s83
    %s98 = sphi 0, %s84
    %s102 = sphi 0, %s102
    %s104 = sphi 0, %s102
    %s105 = sphi 0, %s104
    %s119 = sphi 0, %s105
    %s127 = sphi 0, %s129
    %s130 = sphi 0, %s127
    %s131 = sphi 0, %s130
    %s147 = sphi 0, %s131
  $region4: #{tpu_custom_call.1} parent=0 // loop_header_branch
    %13 = sbr.rel (%p11) target = $region8
  $region5: #{tpu_custom_call.1} parent=0 // loop_body
    %s15 = ssub.s32 %s10, 1
    %s16 = ssub.s32 %s10, 2
    %s23 = sadd.s32 1, %s18
    %p24 = scmp.ge.s32.totalorder %s23, 1
    %s25 = scalar_select %p24, 0, %s23
    %s26 = sadd.s32 1, %s17
    %s27 = scalar_select %p24, %s26, %s17
    %p28 = scmp.ge.s32.totalorder %s27, 2
    %s29 = scalar_select %p28, 0, %s27
    %s30 = ssub.s32 1, %s17
    %s31 = smul.u32 %s18, %s30
    %s32 = ssub.s32 1, %s29
    %s33 = smul.u32 %s25, %s32
    %s34 = ssub.s32 %s31, %s33
    %p35 = scmp.eq.s32.totalorder %s34, 0
    %s37 = sadd.s32 %s36, 1
    %s38 = scalar_select %p35, %s36, %s37
    %p41 = pneg %p35
    %p42 = scmp.eq.s32.totalorder %s10, 1
    %p43 = por %p41, %p42
    %p44 = scmp.ne.s32.totalorder %s36, %s39
    %p45 = scmp.eq.s32.totalorder %s10, 0
    %p46 = por %p44, %p45
    %p47 = scmp.ne.s32.totalorder %s36, %s39
    %p48 = scmp.eq.s32.totalorder %s15, 1
    %p49 = por %p47, %p48
    %p50 = scmp.ne.s32.totalorder %s39, %s40
    %p51 = scmp.eq.s32.totalorder %s15, 0
    %p52 = por %p50, %p51
    %p53 = scmp.ne.s32.totalorder %s39, %s40
    %p54 = scmp.eq.s32.totalorder %s16, 1
    %p55 = por %p53, %p54
    %p57 = scmp.ne.s32.totalorder %s40, %s56
    %p58 = scmp.eq.s32.totalorder %s16, 0
    %p59 = por %p57, %p58
    %s61 = sadd.s32 %s60, 1
    %p64 = scmp.eq.s32.totalorder %s10, 1
    %p65 = scmp.ne.s32.totalorder %s60, %s62
    %p66 = scmp.eq.s32.totalorder %s10, 0
    %p67 = por %p65, %p66
    %p68 = scmp.ne.s32.totalorder %s60, %s62
    %p69 = scmp.eq.s32.totalorder %s15, 1
    %p70 = por %p68, %p69
    %p71 = scmp.ne.s32.totalorder %s62, %s63
    %p72 = scmp.eq.s32.totalorder %s15, 0
    %p73 = por %p71, %p72
    %p74 = scmp.ne.s32.totalorder %s62, %s63
    %p75 = scmp.eq.s32.totalorder %s16, 1
    %p76 = por %p74, %p75
    %p78 = scmp.ne.s32.totalorder %s63, %s77
    %p79 = scmp.eq.s32.totalorder %s16, 0
    %p80 = por %p78, %p79
    %s82 = sadd.s32 %s81, 1
    %p85 = scmp.eq.s32.totalorder %s10, 1
    %p86 = scmp.ne.s32.totalorder %s81, %s83
    %p87 = scmp.eq.s32.totalorder %s10, 0
    %p88 = por %p86, %p87
    %p89 = scmp.ne.s32.totalorder %s81, %s83
    %p90 = scmp.eq.s32.totalorder %s15, 1
    %p91 = por %p89, %p90
    %p92 = scmp.ne.s32.totalorder %s83, %s84
    %p93 = scmp.eq.s32.totalorder %s15, 0
    %p94 = por %p92, %p93
    %p95 = scmp.ne.s32.totalorder %s83, %s84
    %p96 = scmp.eq.s32.totalorder %s16, 1
    %p97 = por %p95, %p96
    %p99 = scmp.ne.s32.totalorder %s84, %s98
    %p100 = scmp.eq.s32.totalorder %s16, 0
    %p101 = por %p99, %p100
    %s103 = sadd.s32 %s102, 1
    %p106 = scmp.eq.s32.totalorder %s10, 1
    %p107 = scmp.ne.s32.totalorder %s102, %s104
    %p108 = scmp.eq.s32.totalorder %s10, 0
    %p109 = por %p107, %p108
    %p110 = scmp.ne.s32.totalorder %s102, %s104
    %p111 = scmp.eq.s32.totalorder %s15, 1
    %p112 = por %p110, %p111
    %p113 = scmp.ne.s32.totalorder %s104, %s105
    %p114 = scmp.eq.s32.totalorder %s15, 0
    %p115 = por %p113, %p114
    %p116 = scmp.ne.s32.totalorder %s104, %s105
    %p117 = scmp.eq.s32.totalorder %s16, 1
    %p118 = por %p116, %p117
    %p120 = scmp.ne.s32.totalorder %s105, %s119
    %p121 = scmp.eq.s32.totalorder %s16, 0
    %p122 = por %p120, %p121
    %s123 = smul.u32 %s18, %s17
    %s124 = smul.u32 %s25, %s29
    %s125 = ssub.s32 %s123, %s124
    %p126 = scmp.eq.s32.totalorder %s125, 0
    %s128 = sadd.s32 %s127, 1
    %s129 = scalar_select %p126, %s127, %s128
    %p132 = pneg %p126
    %p133 = scmp.eq.s32.totalorder %s10, 1
    %p134 = por %p132, %p133
    %p135 = scmp.ne.s32.totalorder %s127, %s130
    %p136 = scmp.eq.s32.totalorder %s10, 0
    %p137 = por %p135, %p136
    %p138 = scmp.ne.s32.totalorder %s127, %s130
    %p139 = scmp.eq.s32.totalorder %s15, 1
    %p140 = por %p138, %p139
    %p141 = scmp.ne.s32.totalorder %s130, %s131
    %p142 = scmp.eq.s32.totalorder %s15, 0
    %p143 = por %p141, %p142
    %p144 = scmp.ne.s32.totalorder %s130, %s131
    %p145 = scmp.eq.s32.totalorder %s16, 1
    %p146 = por %p144, %p145
    %p148 = scmp.ne.s32.totalorder %s131, %s147
    %p149 = scmp.eq.s32.totalorder %s16, 0
    %p150 = por %p148, %p149
    %p151 = scmp.le.s32.totalorder 1, %s10
    %p152 = scmp.lt.s32.totalorder %s10, 3
    %p153 = pnand %p151, %p152
    %p154 = pneg %p153
    // Predicated region
    $region9: #{tpu_custom_call.1} parent=5 // pred_check
      _
    $region10: #{tpu_custom_call.1} parent=5 // pred_check_branch
      %156 = sbr.rel (%p153) target = $region12
    $region11: #{tpu_custom_call.1} parent=5 // pred_region
      %s157 = ssub.s32 %s10, 1
      // Predicated region
      $region13: #{tpu_custom_call.1} parent=11 // pred_check
        %p158 = pneg %p73
      $region14: #{tpu_custom_call.1} parent=11 // pred_check_branch
        %160 = sbr.rel (%p158) target = $region16
      $region15: #{tpu_custom_call.1} parent=11 // pred_region
        _
      $region16: #{tpu_custom_call.1} parent=11 // pred_fallthru
        _
      // Predicated region
      $region17: #{tpu_custom_call.1} parent=11 // pred_check
        %p161 = pneg %p94
      $region18: #{tpu_custom_call.1} parent=11 // pred_check_branch
        %163 = sbr.rel (%p161) target = $region20
      $region19: #{tpu_custom_call.1} parent=11 // pred_region
        _
      $region20: #{tpu_custom_call.1} parent=11 // pred_fallthru
        _
      // Predicated region
      $region21: #{tpu_custom_call.1} parent=11 // pred_check
        %p164 = pneg %p115
      $region22: #{tpu_custom_call.1} parent=11 // pred_check_branch
        %166 = sbr.rel (%p164) target = $region24
      $region23: #{tpu_custom_call.1} parent=11 // pred_region
        _
      $region24: #{tpu_custom_call.1} parent=11 // pred_fallthru
        _
    $region12: #{tpu_custom_call.1} parent=5 // pred_fallthru
      _
    %p167 = scmp.lt.s32.totalorder %s10, 2
    // Predicated region
    $region25: #{tpu_custom_call.1} parent=5 // pred_check
      %p168 = pneg %p167
    $region26: #{tpu_custom_call.1} parent=5 // pred_check_branch
      %170 = sbr.rel (%p168) target = $region28
    $region27: #{tpu_custom_call.1} parent=5 // pred_region
      // Predicated region
      $region29: #{tpu_custom_call.1} parent=27 // pred_check
        %p171 = pneg %p46
      $region30: #{tpu_custom_call.1} parent=27 // pred_check_branch
        %173 = sbr.rel (%p171) target = $region32
      $region31: #{tpu_custom_call.1} parent=27 // pred_region
        %s174 = ssub.s32 1, %s17
        %s175 = smul.u32 %s18, %s174
        %s176 = smul.u32 16, %s175
        %p177 = scmp.lt.s32.totalorder %s176, 15
        %s178 = scalar_select %p177, %s176, 15
        %s179 = smul.addr %s178, 4
        %s180 = scalar_lea.vmem %s0, %s179
        %s181 = ssub.s32 1, %s17
        %s182 = smul.u32 %s18, %s181
        %s183 = smul.u32 16, %s182
      $region32: #{tpu_custom_call.1} parent=27 // pred_fallthru
        _
    $region28: #{tpu_custom_call.1} parent=5 // pred_fallthru
      _
    %p184 = scmp.le.s32.totalorder 1, %s10
    %p185 = scmp.lt.s32.totalorder %s10, 3
    %p186 = pnand %p184, %p185
    %p187 = pneg %p186
    // Predicated region
    $region33: #{tpu_custom_call.1} parent=5 // pred_check
      _
    $region34: #{tpu_custom_call.1} parent=5 // pred_check_branch
      %189 = sbr.rel (%p186) target = $region36
    $region35: #{tpu_custom_call.1} parent=5 // pred_region
      %s190 = ssub.s32 %s10, 1
      %s191 = ssub.s32 1, %s19
      %s192 = smul.u32 %s20, %s191
      %s193 = smul.u32 16, %s192
      %p194 = scmp.lt.s32.totalorder %s193, 15
      %s195 = scalar_select %p194, %s193, 15
      %s196 = smul.addr %s195, 4
      %s197 = scalar_lea.vmem %s0, %s196
      %p198 = pneg %p52
      %p199 = pneg %p49
      %p200 = pneg %p73
      %p201 = pneg %p70
      %p202 = pneg %p94
      %p203 = pneg %p91
      %p204 = pneg %p115
      %p205 = pneg %p112
      %p206 = pneg %p143
      %p207 = pneg %p140
      %s208 = smul.u32 %s20, %s19
      %s209 = smul.u32 16, %s208
      %p210 = scmp.lt.s32.totalorder %s209, 15
      %s211 = scalar_select %p210, %s209, 15
      %s212 = smul.addr %s211, 8
      %s213 = scalar_lea.vmem %s4, %s212
      %s214 = ssub.s32 1, %s19
      %s215 = smul.u32 %s20, %s214
      %s216 = smul.u32 16, %s215
      %p217 = scmp.lt.s32.totalorder %s216, 15
      %s218 = scalar_select %p217, %s216, 15
      %s219 = smul.addr %s218, 4
      %s220 = scalar_lea.vmem %s0, %s219
      %s221 = ssub.s32 1, %s19
      %s222 = smul.u32 %s20, %s221
      %s223 = smul.u32 16, %s222
      %s224 = smul.u32 %s20, %s19
      %s225 = smul.u32 16, %s224
      %p226 = scmp.lt.s32.totalorder %s225, 15
      %s227 = scalar_select %p226, %s225, 15
      %s228 = smul.addr %s227, 8
      %s229 = scalar_lea.vmem %s4, %s228
      %s230 = smul.u32 %s20, %s19
      %s231 = smul.u32 16, %s230
      %p233 = scmp.eq.s32.totalorder %s19, 0
      // Predicated region
      $region37: #{tpu_custom_call.1} parent=35 // pred_check
        %p234 = pneg %p233
      $region38: #{tpu_custom_call.1} parent=35 // pred_check_branch
        %236 = sbr.rel (%p234) target = $region40
      $region39: #{tpu_custom_call.1} parent=35 // pred_region
        %p237 = scmp.eq.s32.totalorder %s20, 0
        // Predicated region
        $region41: #{tpu_custom_call.1} parent=39 // pred_check
          %p238 = pneg %p237
        $region42: #{tpu_custom_call.1} parent=39 // pred_check_branch
          %240 = sbr.rel (%p238) target = $region44
        $region43: #{tpu_custom_call.1} parent=39 // pred_region
          %241 = vst [vmem:[#allocation3] sm:$0x1] 0.0
          %242 = vst [vmem:[#allocation4] sm:$0x1] 0.0
        $region44: #{tpu_custom_call.1} parent=39 // pred_fallthru
          _
        %v243 = vld [vmem:[%s220] sm:$0xf]
        %v244 = vld [vmem:[%s220 + $0x4] sm:$0xf]
        %v245 = vld [vmem:[%s220 + $0x8] sm:$0xf]
        %v246 = vld [vmem:[%s220 + $0xc] sm:$0xf]
        %v247 = vld [vmem:[%s220 + $0x10] sm:$0xf]
        %v248 = vld [vmem:[%s220 + $0x14] sm:$0xf]
        %v249 = vld [vmem:[%s220 + $0x18] sm:$0xf]
        %v250 = vld [vmem:[%s220 + $0x1c] sm:$0xf]
        %v251 = vld [vmem:[%s220 + $0x20] sm:$0xf]
        %v252 = vld [vmem:[%s220 + $0x24] sm:$0xf]
        %v253 = vld [vmem:[%s220 + $0x28] sm:$0xf]
        %v254 = vld [vmem:[%s220 + $0x2c] sm:$0xf]
        %v255 = vld [vmem:[%s220 + $0x30] sm:$0xf]
        %v256 = vld [vmem:[%s220 + $0x34] sm:$0xf]
        %v257 = vld [vmem:[%s220 + $0x38] sm:$0xf]
        %v258 = vld [vmem:[%s220 + $0x3c] sm:$0xf]
        %v259 = vld [vmem:[%s1] sm:$0xf]
        %v260 = vld [vmem:[%s1 + $0x4] sm:$0xf]
        %v261 = vld [vmem:[%s1 + $0x8] sm:$0xf]
        %v262 = vld [vmem:[%s1 + $0xc] sm:$0xf]
        %v263 = vld [vmem:[%s1 + $0x10] sm:$0x3]
        %v280 = vunpack.c.l.b16 %v243
        %v281 = vunpack.c.l.b16 %v244
        %v282 = vunpack.c.l.b16 %v245
        %v283 = vunpack.c.l.b16 %v246
        %v284 = vunpack.c.l.b16 %v247
        %v285 = vunpack.c.l.b16 %v248
        %v286 = vunpack.c.l.b16 %v249
        %v287 = vunpack.c.l.b16 %v250
        %v288 = vunpack.c.l.b16 %v251
        %v289 = vunpack.c.l.b16 %v252
        %v290 = vunpack.c.l.b16 %v253
        %v291 = vunpack.c.l.b16 %v254
        %v292 = vunpack.c.l.b16 %v255
        %v293 = vunpack.c.l.b16 %v256
        %v294 = vunpack.c.l.b16 %v257
        %v295 = vunpack.c.l.b16 %v258
        %v296 = vpack.c.b16 %v281, %v280
        %v297 = vpack.c.b16 %v283, %v282
        %v298 = vpack.c.b16 %v285, %v284
        %v299 = vpack.c.b16 %v287, %v286
        %v300 = vpack.c.b16 %v289, %v288
        %v301 = vpack.c.b16 %v291, %v290
        %v302 = vpack.c.b16 %v293, %v292
        %v303 = vpack.c.b16 %v295, %v294
        %v309 = vunpack.c.l.b16 %v259
        %v310 = vunpack.c.l.b16 %v260
        %v311 = vunpack.c.l.b16 %v261
        %v312 = vunpack.c.l.b16 %v262
        %v313 = vunpack.c.l.b16 %v263
        %v314 = vpack.c.b16 %v310, %v309
        %v315 = vpack.c.b16 %v312, %v311
        %v316 = vpack.c.b16 %v313, %v313
        %vm319 = vcmask 293888
        %v321 = vsel %vm319, %v296, 0
        %v324 = vsel %vm319, %v297, 0
        %v327 = vsel %vm319, %v298, 0
        %v330 = vsel %vm319, %v299, 0
        %v333 = vsel %vm319, %v300, 0
        %v336 = vsel %vm319, %v301, 0
        %v339 = vsel %vm319, %v302, 0
        %v342 = vsel %vm319, %v303, 0
        %vm344 = vcmask 1041408
        %v346 = vsel %vm344, %v316, 0
        %348 = vmatprep.subr.bf16.mxu0 0
        %349 = vmatpush1.bf16.msra.mxu0 0
        %350 = vmatprep.subr.bf16.mxu0 0
        %351 = vmatpush1.bf16.msra.mxu0 0
        %352 = vmatprep.subr.bf16.mxu0 0
        %353 = vmatpush1.bf16.msra.mxu0 0
        %354 = vmatprep.subr.bf16.mxu0 0
        %355 = vmatpush1.bf16.msra.mxu0 0
        %356 = vmatprep.subr.bf16.mxu0 0
        %357 = vmatpush1.bf16.msra.mxu0 0
        %358 = vmatprep.subr.bf16.mxu0 0
        %359 = vmatpush1.bf16.msra.mxu0 %v346
        %360 = vmatprep.subr.bf16.mxu0 0
        %361 = vmatpush1.bf16.msra.mxu0 %v315
        %362 = vmatprep.subr.bf16.mxu0 0
        %363 = vmatpush1.bf16.msra.mxu0 %v314
        %364 = vmatprep.subr.bf16.mxu0 0
        %365 = vmatpush2.bf16.msra.mxu0 0
        %366 = vmatprep.subr.bf16.mxu0 0
        %367 = vmatpush2.bf16.msra.mxu0 0
        %368 = vmatprep.subr.bf16.mxu0 0
        %369 = vmatpush2.bf16.msra.mxu0 0
        %370 = vmatprep.subr.bf16.mxu0 0
        %371 = vmatpush2.bf16.msra.mxu0 0
        %372 = vmatprep.subr.bf16.mxu0 0
        %373 = vmatpush2.bf16.msra.mxu0 0
        %374 = vmatprep.subr.bf16.mxu0 0
        %375 = vmatpush2.bf16.msra.mxu0 0
        %376 = vmatprep.subr.bf16.mxu0 0
        %377 = vmatpush2.bf16.msra.mxu0 0
        %378 = vmatprep.subr.bf16.mxu0 0
        %379 = vmatpush2.bf16.msra.mxu0 0
        %380 = vmatprep.mubr.bf16.mxu0 0
        %381 = vmatmul.mubr.bf16.gmra.mxu0 %v321
        %v382 = vpop.f32.mrf.mxu0
        %v383 = vadd.f32 0.0, %v382
        %v384 = vpop.f32.mrf.mxu0
        %v385 = vpop.f32.mrf.mxu0
        %v386 = vadd.f32 0.0, %v385
        %v387 = vpop.f32.mrf.mxu0
        %388 = vmatprep.mubr.bf16.mxu0 0
        %389 = vmatmul.mubr.bf16.gmra.mxu0 %v324
        %v390 = vpop.f32.mrf.mxu0
        %v391 = vadd.f32 0.0, %v390
        %v392 = vpop.f32.mrf.mxu0
        %v393 = vpop.f32.mrf.mxu0
        %v394 = vadd.f32 0.0, %v393
        %v395 = vpop.f32.mrf.mxu0
        %396 = vmatprep.mubr.bf16.mxu0 0
        %397 = vmatmul.mubr.bf16.gmra.mxu0 %v327
        %v398 = vpop.f32.mrf.mxu0
        %v399 = vadd.f32 0.0, %v398
        %v400 = vpop.f32.mrf.mxu0
        %v401 = vpop.f32.mrf.mxu0
        %v402 = vadd.f32 0.0, %v401
        %v403 = vpop.f32.mrf.mxu0
        %404 = vmatprep.mubr.bf16.mxu0 0
        %405 = vmatmul.mubr.bf16.gmra.mxu0 %v330
        %v406 = vpop.f32.mrf.mxu0
        %v407 = vadd.f32 0.0, %v406
        %v408 = vpop.f32.mrf.mxu0
        %v409 = vpop.f32.mrf.mxu0
        %v410 = vadd.f32 0.0, %v409
        %v411 = vpop.f32.mrf.mxu0
        %412 = vmatprep.mubr.bf16.mxu0 0
        %413 = vmatmul.mubr.bf16.gmra.mxu0 %v333
        %v414 = vpop.f32.mrf.mxu0
        %v415 = vadd.f32 0.0, %v414
        %v416 = vpop.f32.mrf.mxu0
        %v417 = vpop.f32.mrf.mxu0
        %v418 = vadd.f32 0.0, %v417
        %v419 = vpop.f32.mrf.mxu0
        %420 = vmatprep.mubr.bf16.mxu0 0
        %421 = vmatmul.mubr.bf16.gmra.mxu0 %v336
        %v422 = vpop.f32.mrf.mxu0
        %v423 = vadd.f32 0.0, %v422
        %v424 = vpop.f32.mrf.mxu0
        %v425 = vpop.f32.mrf.mxu0
        %v426 = vadd.f32 0.0, %v425
        %v427 = vpop.f32.mrf.mxu0
        %428 = vmatprep.mubr.bf16.mxu0 0
        %429 = vmatmul.mubr.bf16.gmra.mxu0 %v339
        %v430 = vpop.f32.mrf.mxu0
        %v431 = vadd.f32 0.0, %v430
        %v432 = vpop.f32.mrf.mxu0
        %v433 = vpop.f32.mrf.mxu0
        %v434 = vadd.f32 0.0, %v433
        %v435 = vpop.f32.mrf.mxu0
        %436 = vmatprep.mubr.bf16.mxu0 0
        %437 = vmatmul.mubr.bf16.gmra.mxu0 %v342
        %v438 = vpop.f32.mrf.mxu0
        %v439 = vadd.f32 0.0, %v438
        %v440 = vpop.f32.mrf.mxu0
        %v441 = vpop.f32.mrf.mxu0
        %v442 = vadd.f32 0.0, %v441
        %v443 = vpop.f32.mrf.mxu0
        %444 = vdwg.mxu0
        %v445 = vld [vmem:[#allocation3] sm:$0x1]
        %v446 = vadd.f32 %v383, %v386
        %v447 = vadd.f32 %v446, %v391
        %v448 = vadd.f32 %v447, %v394
        %v449 = vadd.f32 %v448, %v399
        %v450 = vadd.f32 %v449, %v402
        %v451 = vadd.f32 %v450, %v407
        %v452 = vadd.f32 %v451, %v410
        %v453 = vadd.f32 %v452, %v415
        %v454 = vadd.f32 %v453, %v418
        %v455 = vadd.f32 %v454, %v423
        %v456 = vadd.f32 %v455, %v426
        %v457 = vadd.f32 %v456, %v431
        %v458 = vadd.f32 %v457, %v434
        %v459 = vadd.f32 %v458, %v439
        %v460 = vadd.f32 %v459, %v442
        %v461 = vrot.slane %v460, 4
        %v462 = vadd.f32 %v460, %v461
        %v463 = vrot.slane %v462, 2
        %v464 = vadd.f32 %v462, %v463
        %v465 = vrot.slane %v464, 1
        %v466 = vadd.f32 %v464, %v465
        %v467 = vadd.f32 %v445, %v466
        %468 = vst [vmem:[#allocation3] sm:$0x1] %v467
        %v469 = vld [vmem:[#allocation4] sm:$0x1]
        %v470 = vmul.f32 %v383, %v383
        %v471 = vmul.f32 %v386, %v386
        %v472 = vmul.f32 %v391, %v391
        %v473 = vmul.f32 %v394, %v394
        %v474 = vmul.f32 %v399, %v399
        %v475 = vmul.f32 %v402, %v402
        %v476 = vmul.f32 %v407, %v407
        %v477 = vmul.f32 %v410, %v410
        %v478 = vmul.f32 %v415, %v415
        %v479 = vmul.f32 %v418, %v418
        %v480 = vmul.f32 %v423, %v423
        %v481 = vmul.f32 %v426, %v426
        %v482 = vmul.f32 %v431, %v431
        %v483 = vmul.f32 %v434, %v434
        %v484 = vmul.f32 %v439, %v439
        %v485 = vmul.f32 %v442, %v442
        %v486 = vadd.f32 %v470, %v471
        %v487 = vadd.f32 %v486, %v472
        %v488 = vadd.f32 %v487, %v473
        %v489 = vadd.f32 %v488, %v474
        %v490 = vadd.f32 %v489, %v475
        %v491 = vadd.f32 %v490, %v476
        %v492 = vadd.f32 %v491, %v477
        %v493 = vadd.f32 %v492, %v478
        %v494 = vadd.f32 %v493, %v479
        %v495 = vadd.f32 %v494, %v480
        %v496 = vadd.f32 %v495, %v481
        %v497 = vadd.f32 %v496, %v482
        %v498 = vadd.f32 %v497, %v483
        %v499 = vadd.f32 %v498, %v484
        %v500 = vadd.f32 %v499, %v485
        %v501 = vrot.slane %v500, 4
        %v502 = vadd.f32 %v500, %v501
        %v503 = vrot.slane %v502, 2
        %v504 = vadd.f32 %v502, %v503
        %v505 = vrot.slane %v504, 1
        %v506 = vadd.f32 %v504, %v505
        %v507 = vadd.f32 %v469, %v506
        %508 = vst [vmem:[#allocation4] sm:$0x1] %v507
        %v509 = vpack.c.bf16 %v386, %v383
        %v510 = vpack.c.bf16 %v394, %v391
        %v511 = vpack.c.bf16 %v402, %v399
        %v512 = vpack.c.bf16 %v410, %v407
        %v513 = vpack.c.bf16 %v418, %v415
        %v514 = vpack.c.bf16 %v426, %v423
        %v515 = vpack.c.bf16 %v434, %v431
        %v516 = vpack.c.bf16 %v442, %v439
        %v525 = vunpack.c.l.b16 %v509
        %v526 = vunpack.c.h.b16 %v509
        %v527 = vunpack.c.l.b16 %v510
        %v528 = vunpack.c.h.b16 %v510
        %v529 = vunpack.c.l.b16 %v511
        %v530 = vunpack.c.h.b16 %v511
        %v531 = vunpack.c.l.b16 %v512
        %v532 = vunpack.c.h.b16 %v512
        %v533 = vunpack.c.l.b16 %v513
        %v534 = vunpack.c.h.b16 %v513
        %v535 = vunpack.c.l.b16 %v514
        %v536 = vunpack.c.h.b16 %v514
        %v537 = vunpack.c.l.b16 %v515
        %v538 = vunpack.c.h.b16 %v515
        %v539 = vunpack.c.l.b16 %v516
        %v540 = vunpack.c.h.b16 %v516
        %v541 = vpack.c.b16 %v525, %v525
        %v542 = vpack.c.b16 %v526, %v526
        %v543 = vpack.c.b16 %v527, %v527
        %v544 = vpack.c.b16 %v528, %v528
        %v545 = vpack.c.b16 %v529, %v529
        %v546 = vpack.c.b16 %v530, %v530
        %v547 = vpack.c.b16 %v531, %v531
        %v548 = vpack.c.b16 %v532, %v532
        %v549 = vpack.c.b16 %v533, %v533
        %v550 = vpack.c.b16 %v534, %v534
        %v551 = vpack.c.b16 %v535, %v535
        %v552 = vpack.c.b16 %v536, %v536
        %v553 = vpack.c.b16 %v537, %v537
        %v554 = vpack.c.b16 %v538, %v538
        %v555 = vpack.c.b16 %v539, %v539
        %v556 = vpack.c.b16 %v540, %v540
        %s573 = smul.u32 %s20, 16
        %s574 = smul.addr %s573, 4
        %s575 = scalar_lea.vmem [#allocation2], %s574
        %576 = vst [vmem:[%s575] sm:$0xf] %v541
        %577 = vst [vmem:[%s575 + $0x4] sm:$0xf] %v542
        %578 = vst [vmem:[%s575 + $0x8] sm:$0xf] %v543
        %579 = vst [vmem:[%s575 + $0xc] sm:$0xf] %v544
        %580 = vst [vmem:[%s575 + $0x10] sm:$0xf] %v545
        %581 = vst [vmem:[%s575 + $0x14] sm:$0xf] %v546
        %582 = vst [vmem:[%s575 + $0x18] sm:$0xf] %v547
        %583 = vst [vmem:[%s575 + $0x1c] sm:$0xf] %v548
        %584 = vst [vmem:[%s575 + $0x20] sm:$0xf] %v549
        %585 = vst [vmem:[%s575 + $0x24] sm:$0xf] %v550
        %586 = vst [vmem:[%s575 + $0x28] sm:$0xf] %v551
        %587 = vst [vmem:[%s575 + $0x2c] sm:$0xf] %v552
        %588 = vst [vmem:[%s575 + $0x30] sm:$0xf] %v553
        %589 = vst [vmem:[%s575 + $0x34] sm:$0xf] %v554
        %590 = vst [vmem:[%s575 + $0x38] sm:$0xf] %v555
        %591 = vst [vmem:[%s575 + $0x3c] sm:$0xf] %v556
      $region40: #{tpu_custom_call.1} parent=35 // pred_fallthru
        _
      %p592 = scmp.eq.s32.totalorder %s19, 1
      // Predicated region
      $region45: #{tpu_custom_call.1} parent=35 // pred_check
        %p593 = pneg %p592
      $region46: #{tpu_custom_call.1} parent=35 // pred_check_branch
        %595 = sbr.rel (%p593) target = $region48
      $region47: #{tpu_custom_call.1} parent=35 // pred_region
        %p596 = scmp.eq.s32.totalorder %s20, 0
        // Predicated region
        $region49: #{tpu_custom_call.1} parent=47 // pred_check
          %p597 = pneg %p596
        $region50: #{tpu_custom_call.1} parent=47 // pred_check_branch
          %599 = sbr.rel (%p597) target = $region52
        $region51: #{tpu_custom_call.1} parent=47 // pred_region
          %v600 = vld [vmem:[#allocation3] sm:$0x1]
          %v601 = vmul.f32 %v600, 0.0078125
          %v602 = vld [vmem:[#allocation4] sm:$0x1]
          %v603 = vmul.f32 %v602, 0.0078125
          %v604 = vmul.f32 %v601, %v601
          %v605 = vsub.f32 %v603, %v604
          %v606 = vmax.f32 %v605, 0.0
          %v607 = vadd.f32 %v606, 1e-05
          %v608 = vrsqrt.pop %v607
          %v609 = vld [vmem:[%s2] sm:$0x1]
          %v610 = vmul.f32 %v609, %v608
          %611 = vst [vmem:[#allocation5] sm:$0x1] %v610
          %v612 = vld [vmem:[%s3] sm:$0x1]
          %v613 = vmul.f32 %v601, %v610
          %v614 = vsub.f32 %v612, %v613
          %615 = vst [vmem:[#allocation6] sm:$0x1] %v614
        $region52: #{tpu_custom_call.1} parent=47 // pred_fallthru
          _
        %s616 = smul.u32 %s20, 16
        %s617 = smul.addr %s616, 4
        %s618 = scalar_lea.vmem [#allocation2], %s617
        %v619 = vld [vmem:[%s618] sm:$0xf]
        %v620 = vld [vmem:[%s618 + $0x4] sm:$0xf]
        %v621 = vld [vmem:[%s618 + $0x8] sm:$0xf]
        %v622 = vld [vmem:[%s618 + $0xc] sm:$0xf]
        %v623 = vld [vmem:[%s618 + $0x10] sm:$0xf]
        %v624 = vld [vmem:[%s618 + $0x14] sm:$0xf]
        %v625 = vld [vmem:[%s618 + $0x18] sm:$0xf]
        %v626 = vld [vmem:[%s618 + $0x1c] sm:$0xf]
        %v627 = vld [vmem:[%s618 + $0x20] sm:$0xf]
        %v628 = vld [vmem:[%s618 + $0x24] sm:$0xf]
        %v629 = vld [vmem:[%s618 + $0x28] sm:$0xf]
        %v630 = vld [vmem:[%s618 + $0x2c] sm:$0xf]
        %v631 = vld [vmem:[%s618 + $0x30] sm:$0xf]
        %v632 = vld [vmem:[%s618 + $0x34] sm:$0xf]
        %v633 = vld [vmem:[%s618 + $0x38] sm:$0xf]
        %v634 = vld [vmem:[%s618 + $0x3c] sm:$0xf]
        %v635 = vunpack.c.l.bf16 %v619
        %v636 = vunpack.c.l.bf16 %v620
        %v637 = vunpack.c.l.bf16 %v621
        %v638 = vunpack.c.l.bf16 %v622
        %v639 = vunpack.c.l.bf16 %v623
        %v640 = vunpack.c.l.bf16 %v624
        %v641 = vunpack.c.l.bf16 %v625
        %v642 = vunpack.c.l.bf16 %v626
        %v643 = vunpack.c.l.bf16 %v627
        %v644 = vunpack.c.l.bf16 %v628
        %v645 = vunpack.c.l.bf16 %v629
        %v646 = vunpack.c.l.bf16 %v630
        %v647 = vunpack.c.l.bf16 %v631
        %v648 = vunpack.c.l.bf16 %v632
        %v649 = vunpack.c.l.bf16 %v633
        %v650 = vunpack.c.l.bf16 %v634
        %v651 = vld [vmem:[#allocation5] sm:$0x1]
        %v653 = vlaneseq
        %v654 = vshrl.u32 %v653, 7
        %v655 = vsub.s32 0, %v654
        %v656 = vrot.slane %v651, %v655
        %v658 = vmul.f32 %v635, %v656
        %v659 = vmul.f32 %v636, %v656
        %v660 = vmul.f32 %v637, %v656
        %v661 = vmul.f32 %v638, %v656
        %v662 = vmul.f32 %v639, %v656
        %v663 = vmul.f32 %v640, %v656
        %v664 = vmul.f32 %v641, %v656
        %v665 = vmul.f32 %v642, %v656
        %v666 = vmul.f32 %v643, %v656
        %v667 = vmul.f32 %v644, %v656
        %v668 = vmul.f32 %v645, %v656
        %v669 = vmul.f32 %v646, %v656
        %v670 = vmul.f32 %v647, %v656
        %v671 = vmul.f32 %v648, %v656
        %v672 = vmul.f32 %v649, %v656
        %v673 = vmul.f32 %v650, %v656
        %v674 = vld [vmem:[#allocation6] sm:$0x1]
        %v676 = vlaneseq
        %v677 = vshrl.u32 %v676, 7
        %v678 = vsub.s32 0, %v677
        %v679 = vrot.slane %v674, %v678
        %v681 = vadd.f32 %v658, %v679
        %v682 = vadd.f32 %v659, %v679
        %v683 = vadd.f32 %v660, %v679
        %v684 = vadd.f32 %v661, %v679
        %v685 = vadd.f32 %v662, %v679
        %v686 = vadd.f32 %v663, %v679
        %v687 = vadd.f32 %v664, %v679
        %v688 = vadd.f32 %v665, %v679
        %v689 = vadd.f32 %v666, %v679
        %v690 = vadd.f32 %v667, %v679
        %v691 = vadd.f32 %v668, %v679
        %v692 = vadd.f32 %v669, %v679
        %v693 = vadd.f32 %v670, %v679
        %v694 = vadd.f32 %v671, %v679
        %v695 = vadd.f32 %v672, %v679
        %v696 = vadd.f32 %v673, %v679
        %v697 = vmax.f32 %v681, 0.0
        %v698 = vmax.f32 %v682, 0.0
        %v699 = vmax.f32 %v683, 0.0
        %v700 = vmax.f32 %v684, 0.0
        %v701 = vmax.f32 %v685, 0.0
        %v702 = vmax.f32 %v686, 0.0
        %v703 = vmax.f32 %v687, 0.0
        %v704 = vmax.f32 %v688, 0.0
        %v705 = vmax.f32 %v689, 0.0
        %v706 = vmax.f32 %v690, 0.0
        %v707 = vmax.f32 %v691, 0.0
        %v708 = vmax.f32 %v692, 0.0
        %v709 = vmax.f32 %v693, 0.0
        %v710 = vmax.f32 %v694, 0.0
        %v711 = vmax.f32 %v695, 0.0
        %v712 = vmax.f32 %v696, 0.0
        %vm713 = vcmask 64512
        %714 = vst.msk [vmem:[%s229] sm:$0xff] %vm713, %v697
        %715 = vst.msk [vmem:[%s229 + $0x8] sm:$0xff] %vm713, %v698
        %716 = vst.msk [vmem:[%s229 + $0x10] sm:$0xff] %vm713, %v699
        %717 = vst.msk [vmem:[%s229 + $0x18] sm:$0xff] %vm713, %v700
        %718 = vst.msk [vmem:[%s229 + $0x20] sm:$0xff] %vm713, %v701
        %719 = vst.msk [vmem:[%s229 + $0x28] sm:$0xff] %vm713, %v702
        %720 = vst.msk [vmem:[%s229 + $0x30] sm:$0xff] %vm713, %v703
        %721 = vst.msk [vmem:[%s229 + $0x38] sm:$0xff] %vm713, %v704
        %722 = vst.msk [vmem:[%s229 + $0x40] sm:$0xff] %vm713, %v705
        %723 = vst.msk [vmem:[%s229 + $0x48] sm:$0xff] %vm713, %v706
        %724 = vst.msk [vmem:[%s229 + $0x50] sm:$0xff] %vm713, %v707
        %725 = vst.msk [vmem:[%s229 + $0x58] sm:$0xff] %vm713, %v708
        %726 = vst.msk [vmem:[%s229 + $0x60] sm:$0xff] %vm713, %v709
        %727 = vst.msk [vmem:[%s229 + $0x68] sm:$0xff] %vm713, %v710
        %728 = vst.msk [vmem:[%s229 + $0x70] sm:$0xff] %vm713, %v711
        %729 = vst.msk [vmem:[%s229 + $0x78] sm:$0xff] %vm713, %v712
      $region48: #{tpu_custom_call.1} parent=35 // pred_fallthru
        _
      %s730 = smul.u32 %s20, %s19
      %s731 = smul.u32 16, %s730
      %p732 = scmp.lt.s32.totalorder %s731, 15
      %s733 = scalar_select %p732, %s731, 15
      %s734 = smul.addr %s733, 8
      %s735 = scalar_lea.vmem %s4, %s734
      // Predicated region
      $region53: #{tpu_custom_call.1} parent=35 // pred_check
        %p736 = pneg %p140
      $region54: #{tpu_custom_call.1} parent=35 // pred_check_branch
        %738 = sbr.rel (%p736) target = $region56
      $region55: #{tpu_custom_call.1} parent=35 // pred_region
        %s739 = smul.u32 %s20, %s19
        %s740 = smul.u32 16, %s739
      $region56: #{tpu_custom_call.1} parent=35 // pred_fallthru
        _
    $region36: #{tpu_custom_call.1} parent=5 // pred_fallthru
      _
    %p741 = scmp.le.s32.totalorder 2, %s10
    // Predicated region
    $region57: #{tpu_custom_call.1} parent=5 // pred_check
      %p742 = pneg %p741
    $region58: #{tpu_custom_call.1} parent=5 // pred_check_branch
      %744 = sbr.rel (%p742) target = $region60
    $region59: #{tpu_custom_call.1} parent=5 // pred_region
      %s745 = ssub.s32 %s10, 2
      // Predicated region
      $region61: #{tpu_custom_call.1} parent=59 // pred_check
        %p746 = pneg %p146
      $region62: #{tpu_custom_call.1} parent=59 // pred_check_branch
        %748 = sbr.rel (%p746) target = $region64
      $region63: #{tpu_custom_call.1} parent=59 // pred_region
        %s749 = smul.u32 %s22, %s21
        %s750 = smul.u32 16, %s749
        %p751 = scmp.lt.s32.totalorder %s750, 15
        %s752 = scalar_select %p751, %s750, 15
        %s753 = smul.addr %s752, 8
        %s754 = scalar_lea.vmem %s4, %s753
      $region64: #{tpu_custom_call.1} parent=59 // pred_fallthru
        _
    $region60: #{tpu_custom_call.1} parent=5 // pred_fallthru
      _
  $region6: #{tpu_custom_call.1} parent=0 // loop_footer
    %s14 = sadd.s32 1, %s10
  $region7: #{tpu_custom_call.1} parent=0 // loop_footer_branch
    %9 = sbr.rel target = $region3
  $region8: #{tpu_custom_call.1} parent=0 // loop_exit
    _

</llo_original>
